<compile_context>
chip_gen: v5e
topology: v5e:2x2
jax: 0.10.0
libtpu: 0.0.40
codegen_flags: <defaults>
</compile_context>

<pallas_src>
import jax
import jax.numpy as jnp
import numpy as np
from jax.experimental import pallas as pl
from jax.experimental.pallas import tpu as pltpu

_NEG_SENT = -10000.0
_POS_SENT = 10000.0

_MAX_BLOCK_BYTES = 2 * 1024 * 1024   # per array per block (8 MiB working set)
_MIN_PAR_BYTES = 1024 * 1024         # don't split into chunks smaller than this


# ------------------------------ kernel builders -------------------------------

def _make_kernel(kind, consts):
    if kind == "uniform":
        inv_step, ofs, alpha, beta, lo_v, hi_v, lo_dom, hi_dom = consts

        def kernel(x_ref, o_ref):
            x = x_ref[...]
            s = x * inv_step                 # exact: inv_step is a power of two
            idx = jnp.ceil(s) - ofs          # exact integer-valued bucket index
            val = idx * beta + alpha         # affine value map (host-verified)
            val = jnp.minimum(jnp.maximum(val, lo_v), hi_v)
            o_ref[...] = jnp.where((x > lo_dom) & (x <= hi_dom), val, x)

        return kernel

    if kind == "sorted":
        bounds, g_vals, lo_dom, hi_dom = consts
        k = len(g_vals)

        def kernel(x_ref, o_ref):
            x = x_ref[...]
            out = jnp.full_like(x, g_vals[k - 1])
            for i in range(k - 2, -1, -1):   # statically unrolled, constants baked
                out = jnp.where(x <= bounds[i], g_vals[i], out)
            # +/-10000 sentinels: out-of-domain elements pass through unchanged.
            o_ref[...] = jnp.where((x > lo_dom) & (x <= hi_dom), out, x)

        return kernel

    quants, vals = consts
    kk = len(quants)

    def kernel(x_ref, o_ref):
        x = x_ref[...]
        for i in range(kk):                  # exact sequential chain
            lo = _NEG_SENT if i == 0 else quants[i]
            hi = _POS_SENT if i >= kk - 1 else quants[i + 1]
            x = jnp.where((x > lo) & (x <= hi), vals[i], x)
        o_ref[...] = x

    return kernel


# --------------------------- host-side table folding ---------------------------

def _fit_affine_clip(g):
    """Find (alpha, beta, lo, hi) with clip(alpha + beta*i, lo, hi) == g[i] exactly
    (verified with both f32 mul-then-add and FMA-style rounding), else None."""
    k = g.shape[0]
    lo, hi = float(np.min(g)), float(np.max(g))
    if float(np.float32(lo)) != lo or float(np.float32(hi)) != hi:
        return None
    if lo == hi:
        return lo, 0.0, lo, hi
    idx64 = np.arange(k, dtype=np.float64)
    idx32 = idx64.astype(np.float32)
    betas = list(dict.fromkeys(float(d) for d in np.diff(g) if d != 0.0))
    betas += [hi - lo, lo - hi]
    interior = np.nonzero((g > lo) & (g < hi))[0]
    anchors = [int(a) for a in (interior if interior.size else np.arange(k))]
    lof, hif = np.float32(lo), np.float32(hi)
    for beta in betas:
        bf = np.float32(beta)
        if bf == 0:
            continue
        for a in anchors:
            af = np.float32(np.float64(g[a]) - np.float64(bf) * a)
            sep = (bf * idx32) + af                                   # f32 mul, f32 add
            fma = (np.float64(bf) * idx64 + np.float64(af)).astype(np.float32)
            ok = True
            for pred in (sep, fma):
                p = np.minimum(np.maximum(pred, lof), hif)
                if not np.array_equal(p.astype(np.float64), g):
                    ok = False
                    break
            if not ok:
                continue
            # out-of-range bucket indices must clamp to the end values
            if bf > 0 and (g[0] != lo or g[-1] != hi):
                continue
            if bf < 0 and (g[0] != hi or g[-1] != lo):
                continue
            return float(af), float(bf), lo, hi
    return None


def _try_uniform_affine(q, g, lo_dom, hi_dom):
    """Enable the arithmetic-bucketization fast path only when it is provably
    bit-exact for f32 inputs (power-of-two step, exact boundaries, affine values)."""
    k = q.shape[0]
    if k < 3:
        return None
    bounds = q[1:]
    diffs = np.diff(bounds)
    if not np.all(diffs > 0):
        return None
    step = float(diffs[0])
    if not np.all(diffs == step):
        return None
    mant, _ = np.frexp(step)
    if mant != 0.5 or not (2.0 ** -30 <= step <= 1.0):
        return None                       # require step = exact power of two, <= 1
    inv_step = 1.0 / step
    ofs = float(bounds[0] * inv_step)
    if ofs != np.floor(ofs) or abs(ofs) > 2 ** 22 or (k + abs(ofs)) > 2 ** 23:
        return None
    # exact bucketization: bounds[i] * inv_step must equal i + ofs exactly
    if not np.all(bounds * inv_step == np.arange(k - 1, dtype=np.float64) + ofs):
        return None
    fit = _fit_affine_clip(np.asarray(g, dtype=np.float64))
    if fit is None:
        return None
    alpha, beta, lo_v, hi_v = fit
    return (inv_step, ofs, alpha, beta, lo_v, hi_v, lo_dom, hi_dom)


def _fold_table(quants, vals):
    """Preprocess the tiny quantization table on the host (must be concrete)."""
    q32 = np.asarray(quants).astype(np.float32).reshape(-1)
    v32 = np.asarray(vals).astype(np.float32).reshape(-1)
    q = q32.astype(np.float64)
    v = v32.astype(np.float64)
    k = q.shape[0]
    # Effective values: push vals[i] through replacements i+1..K-1 (O(K^2) scalars).
    g = v.copy()
    for i in range(k):
        cur = g[i]
        for j in range(i + 1, k):
            lo = q[j]
            hi = _POS_SENT if j >= k - 1 else q[j + 1]
            if (cur > lo) and (cur <= hi):
                cur = v[j]
        g[i] = cur
    is_sorted = bool(np.all(q[:-1] <= q[1:])) if k > 1 else True
    if not is_sorted:
        return "exact", (tuple(float(t) for t in q), tuple(float(t) for t in v))
    lo_dom = float(min(_NEG_SENT, q[1])) if k > 1 else _NEG_SENT
    hi_dom = float(max(_POS_SENT, q[-1])) if k > 1 else _POS_SENT
    uni = _try_uniform_affine(q, g, lo_dom, hi_dom)
    if uni is not None:
        return "uniform", uni
    return "sorted", (tuple(float(b) for b in q[1:]),
                      tuple(float(t) for t in g), lo_dom, hi_dom)


# ------------------------------- tiling / launch -------------------------------

def _choose_lead_block(lead, slice_bytes, align):
    """Leading-dim block size: largest block within the VMEM budget, split into
    2-4 >=1 MiB chunks when the tensor is big enough (feeds v7x's 2 TCs)."""
    total = lead * slice_bytes
    want = max(1, min(4, total // _MIN_PAR_BYTES), -(-total // _MAX_BLOCK_BYTES))
    b0 = -(-lead // want)
    if b0 < lead:
        b0 = min(lead, -(-b0 // align) * align)
    if b0 * slice_bytes <= _MAX_BLOCK_BYTES:
        return b0
    fit = (_MAX_BLOCK_BYTES // slice_bytes) // align * align
    if fit >= align:
        return min(lead, fit)
    if total <= _MAX_BLOCK_BYTES:
        return lead
    return None


def _run_grid(kernel, x, block_shape):
    ndim = x.ndim

    def index_map(i):
        return (i,) + (0,) * (ndim - 1)

    return pl.pallas_call(
        kernel,
        out_shape=jax.ShapeDtypeStruct(x.shape, x.dtype),
        grid=(pl.cdiv(x.shape[0], block_shape[0]),),
        in_specs=[pl.BlockSpec(block_shape, index_map)],
        out_specs=pl.BlockSpec(block_shape, index_map),
        compiler_params=pltpu.CompilerParams(dimension_semantics=("parallel",)),
    )(x)


def _padded_flat(kernel, x, n, sub, itemsize):
    # TODO(synk): this fallback still pays pad+slice HBM passes; it is only hit
    # for shapes whose natural trailing dims cannot form a <= 2 MiB block.
    cols = 512
    rows = -(-n // cols)
    rows = -(-rows // sub) * sub
    xf = x.reshape(-1)
    pad = rows * cols - n
    if pad:
        xf = jnp.pad(xf, (0, pad))
    x2 = xf.reshape(rows, cols)
    b0 = _choose_lead_block(rows, cols * itemsize, sub)
    out = _run_grid(kernel, x2, (b0, cols))
    return out.reshape(-1)[:n]


# ----------------------------------- forward -----------------------------------

def tmp_relu_4_forward(x, quants, vals):
    """Pallas TPU forward of tmpRelu_4 (quants/vals are concrete parameters)."""
    if not jnp.issubdtype(x.dtype, jnp.floating):
        x = x.astype(jnp.float32)
    kind, consts = _fold_table(quants, vals)
    kernel = _make_kernel(kind, consts)

    orig_shape = x.shape
    n = x.size
    if n == 0:
        return x
    itemsize = x.dtype.itemsize
    sub = {1: 32, 2: 16}.get(itemsize, 8)       # dtype-aware min sublane multiple

    # Zero-copy view: lane-dense 2-D collapse when it is free, else native shape.
    if x.ndim < 2:
        xv = x.reshape(1, n)
    elif orig_shape[-1] % 128 == 0 and orig_shape[-2] % sub == 0:
        xv = x.reshape(n // orig_shape[-1], orig_shape[-1])
    else:
        xv = x                                   # native N-D, no pad / no relayout

    lead = xv.shape[0]
    slice_bytes = (n // lead) * itemsize
    align = sub if xv.ndim == 2 else 1           # trailing dims of N-D blocks are full
    b0 = _choose_lead_block(lead, slice_bytes, align)
    if b0 is None:
        out = _padded_flat(kernel, x, n, sub, itemsize)
    else:
        out = _run_grid(kernel, xv, (b0,) + xv.shape[1:])
    return out.reshape(orig_shape)


# ----------------------------- pure-JAX references ------------------------------

def optimal_replacer_ref(x, quants, vals):
    quants = jnp.asarray(quants, dtype=x.dtype)
    vals = jnp.asarray(vals, dtype=x.dtype)
    k = quants.shape[0]
    for i in range(k):
        lo = _NEG_SENT if i == 0 else quants[i]
        hi = _POS_SENT if i >= k - 1 else quants[i + 1]
        x = jnp.where((x > lo) & (x <= hi), vals[i], x)
    return x


def calibrate_relu(bits=4, ranges=(-1.0, 1.0)):
    """JAX port of calibrate(nn.ReLU(), bits, ranges)."""
    steps = 2 ** bits
    s = (ranges[1] - ranges[0]) / steps
    pts = [ranges[0]]
    for _ in range(steps - 1):
        pts.append(pts[-1] + s)
    pts.append(ranges[1])
    q = jnp.array(pts, dtype=jnp.float32)
    return q, jnp.maximum(q, 0.0)


# ------------------------------------- main -------------------------------------

if __name__ == "__main__":
    key = jax.random.PRNGKey(0)
    x = jax.random.uniform(key, (2, 4, 16, 16), dtype=jnp.float32,
                           minval=-1.5, maxval=1.5)

    # Case 1: module default __init__ params: quants=[0], vals=[0].
    q0 = jnp.array([0.0], dtype=jnp.float32)
    v0 = jnp.array([0.0], dtype=jnp.float32)
    out0 = jax.block_until_ready(tmp_relu_4_forward(x, q0, v0))
    np.testing.assert_array_equal(np.asarray(out0),
                                  np.asarray(optimal_replacer_ref(x, q0, v0)))

    # Case 2: calibrated 4-bit ReLU table -> uniform/affine fast-path kernel.
    qc, vc = calibrate_relu(bits=4, ranges=(-1.0, 1.0))
    out1 = jax.block_until_ready(tmp_relu_4_forward(x, qc, vc))
    np.testing.assert_array_equal(np.asarray(out1),
                                  np.asarray(optimal_replacer_ref(x, qc, vc)))

    # Case 3: larger NCHW activation -> native-shape single block, no pad/slice.
    xb = jax.random.uniform(jax.random.PRNGKey(1), (4, 16, 64, 64),
                            dtype=jnp.float32, minval=-1.5, maxval=1.5)
    out2 = jax.block_until_ready(tmp_relu_4_forward(xb, qc, vc))
    np.testing.assert_array_equal(np.asarray(out2),
                                  np.asarray(optimal_replacer_ref(xb, qc, vc)))

    # Case 4: unsorted table -> exact sequential-chain fallback kernel.
    qu = jnp.array([0.5, -0.5, 0.25], dtype=jnp.float32)
    vu = jnp.array([1.0, 2.0, 3.0], dtype=jnp.float32)
    out3 = jax.block_until_ready(tmp_relu_4_forward(x, qu, vu))
    np.testing.assert_array_equal(np.asarray(out3),
                                  np.asarray(optimal_replacer_ref(x, qu, vu)))

    # Case 5: 128-aligned trailing dim -> lane-dense 2-D view + multi-block grid.
    xc = jax.random.uniform(jax.random.PRNGKey(2), (8, 8, 128, 128),
                            dtype=jnp.float32, minval=-1.5, maxval=1.5)
    out4 = jax.block_until_ready(tmp_relu_4_forward(xc, qc, vc))
    np.testing.assert_array_equal(np.asarray(out4),
                                  np.asarray(optimal_replacer_ref(xc, qc, vc)))

    assert out0.shape == x.shape and out1.shape == x.shape
    assert out2.shape == xb.shape and out4.shape == xc.shape
    print("KERNEL_OK")
</pallas_src>

<mosaic_0001>
module attributes {stable_mosaic.version = 11 : i64} {
  func.func @kernel(%arg0: i32, %arg1: memref<2x4x16x16xf32, #tpu.memory_space<vmem>>, %arg2: memref<2x4x16x16xf32, #tpu.memory_space<vmem>>) attributes {dimension_semantics = [#tpu.dimension_semantics<parallel>], iteration_bounds = array<i64: 1>, scalar_prefetch = 0 : i64, scratch_operands = 0 : i64, tpu.core_type = #tpu.core_type<tc>, window_params = [{transform_indices = @transform_0, window_bounds = array<i64: 2, 4, 16, 16>}, {transform_indices = @transform_1, window_bounds = array<i64: 2, 4, 16, 16>}]} {
    %c0 = arith.constant 0 : index
    %c0_0 = arith.constant 0 : index
    %c0_1 = arith.constant 0 : index
    %c0_2 = arith.constant 0 : index
    %0 = vector.load %arg1[%c0, %c0_0, %c0_1, %c0_2] : memref<2x4x16x16xf32, #tpu.memory_space<vmem>>, vector<2x4x16x16xf32>
    %cst = arith.constant 0.000000e+00 : f32
    %1 = vector.broadcast %cst : f32 to vector<2x4x16x16xf32>
    %cst_3 = arith.constant -1.000000e+04 : f32
    %2 = vector.broadcast %cst_3 : f32 to vector<2x4x16x16xf32>
    %3 = arith.cmpf ogt, %0, %2 : vector<2x4x16x16xf32>
    %cst_4 = arith.constant 1.000000e+04 : f32
    %4 = vector.broadcast %cst_4 : f32 to vector<2x4x16x16xf32>
    %5 = arith.cmpf ole, %0, %4 : vector<2x4x16x16xf32>
    %6 = arith.andi %3, %5 : vector<2x4x16x16xi1>
    %7 = arith.select %6, %1, %0 : vector<2x4x16x16xi1>, vector<2x4x16x16xf32>
    %c0_5 = arith.constant 0 : index
    %c0_6 = arith.constant 0 : index
    %c0_7 = arith.constant 0 : index
    %c0_8 = arith.constant 0 : index
    %8 = vector.load %arg2[%c0_5, %c0_6, %c0_7, %c0_8] : memref<2x4x16x16xf32, #tpu.memory_space<vmem>>, vector<2x4x16x16xf32>
    tpu.vector_store %arg2[%c0_5, %c0_6, %c0_7, %c0_8], %7 {strides = array<i32>} : memref<2x4x16x16xf32, #tpu.memory_space<vmem>>, vector<2x4x16x16xf32>,
    return
  }
  func.func @transform_0(%arg0: i32) -> (i32, i32, i32, i32) {
    %c0_i32 = arith.constant 0 : i32
    %c0_i32_0 = arith.constant 0 : i32
    %c0_i32_1 = arith.constant 0 : i32
    %c0_i32_2 = arith.constant 0 : i32
    return %arg0, %c0_i32, %c0_i32_0, %c0_i32_1 : i32, i32, i32, i32
  }
  func.func @transform_1(%arg0: i32) -> (i32, i32, i32, i32) {
    %c0_i32 = arith.constant 0 : i32
    %c0_i32_0 = arith.constant 0 : i32
    %c0_i32_1 = arith.constant 0 : i32
    %c0_i32_2 = arith.constant 0 : i32
    return %arg0, %c0_i32, %c0_i32_0, %c0_i32_1 : i32, i32, i32, i32
  }
}

</mosaic_0001>

<llo_original>
// kernel: tpu_custom_call.1
$region0: #{tpu_custom_call.1}
  #allocation0 [shape = 'u32[]', space=smem, size = 0x4, offset = 0x4, fixed_abs, tag = 'smem constant byte address 0x4 - core index']
  #allocation1 [shape = 'u32[72,128]{1,0:T(1,128)}', space=vmem, size = 0x9000, scoped, tag = 'internal scratch']
  %s0 = inlined_call_operand.hbm [shape: f32[2,4,16,16], index: 0, kind: input, shape index: {}]
  %s1 = inlined_call_operand.hbm [shape: f32[2,4,16,16], index: 1, kind: output, shape index: {}]
  %s2 = sld [smem:[#allocation0]]
  $region18: #{tpu_custom_call.1} parent=0
    _
  %s4 = ssub.s32 1, %s2
  %s5 = scalar_select 0, %s4, %s2
  $region1: #{tpu_custom_call.1} parent=0
    #allocation2 [shape = 'u8[65536]{0}', space=vmem, size = 0x10000, scoped, tag = 'input window, operand 0, single buffered']
    #allocation3 [shape = 's32[1]{0}', space=sflag, size = 0x4, scoped, tag = 'scoped memory for tpu_custom_call.1']
    #allocation4 [shape = 's32[1]{0}', space=sflag, size = 0x4, scoped, tag = 'scoped memory for tpu_custom_call.1']
    #allocation5 [shape = 'u8[65536]{0}', space=vmem, size = 0x10000, scoped, tag = 'output window, operand 0, single buffered']
    %6 = vsyncpa [#allocation3], 0
    %7 = vsyncpa [#allocation4], 0
    // Predicated region
    $region2: #{tpu_custom_call.1} parent=1 // pred_check
      _
    $region3: #{tpu_custom_call.1} parent=1 // pred_check_branch
      %9 = sbr.rel (0) target = $region5
    $region4: #{tpu_custom_call.1} parent=1 // pred_region
      %11 = vsyncadd [#allocation3], 0
      %s12 = sshll.u32 %s0, 4
      %s13 = int_to_ptr.hbm [resolvable:$true] %s12
      %s14 = sshll.u32 [#allocation2], 4
      %s15 = int_to_ptr.vmem [resolvable:$true] %s14
      %20 = dma.hbm_to_vmem [thread:$0]  %s13, 2048, %s15, [#allocation3], 128, 128, 8
    $region5: #{tpu_custom_call.1} parent=1 // pred_fallthru
      _
    // Predicated region
    $region6: #{tpu_custom_call.1} parent=1 // pred_check
      _
    $region7: #{tpu_custom_call.1} parent=1 // pred_check_branch
      %22 = sbr.rel (0) target = $region9
    $region8: #{tpu_custom_call.1} parent=1 // pred_region
      %24 = dma.done [#allocation3], 2048
    $region9: #{tpu_custom_call.1} parent=1 // pred_fallthru
      _
    %v25 = vld [vmem:[#allocation2] sm:$0xff]
    %v26 = vld [vmem:[#allocation2 + $0x8] sm:$0xff]
    %v27 = vld [vmem:[#allocation2 + $0x10] sm:$0xff]
    %v28 = vld [vmem:[#allocation2 + $0x18] sm:$0xff]
    %v29 = vld [vmem:[#allocation2 + $0x20] sm:$0xff]
    %v30 = vld [vmem:[#allocation2 + $0x28] sm:$0xff]
    %v31 = vld [vmem:[#allocation2 + $0x30] sm:$0xff]
    %v32 = vld [vmem:[#allocation2 + $0x38] sm:$0xff]
    %v33 = vld [vmem:[#allocation2 + $0x40] sm:$0xff]
    %v34 = vld [vmem:[#allocation2 + $0x48] sm:$0xff]
    %v35 = vld [vmem:[#allocation2 + $0x50] sm:$0xff]
    %v36 = vld [vmem:[#allocation2 + $0x58] sm:$0xff]
    %v37 = vld [vmem:[#allocation2 + $0x60] sm:$0xff]
    %v38 = vld [vmem:[#allocation2 + $0x68] sm:$0xff]
    %v39 = vld [vmem:[#allocation2 + $0x70] sm:$0xff]
    %v40 = vld [vmem:[#allocation2 + $0x78] sm:$0xff]
    %vm41 = vcmp.gt.f32.partialorder %v25, -10000.0
    %vm42 = vcmp.gt.f32.partialorder %v26, -10000.0
    %vm43 = vcmp.gt.f32.partialorder %v27, -10000.0
    %vm44 = vcmp.gt.f32.partialorder %v28, -10000.0
    %vm45 = vcmp.gt.f32.partialorder %v29, -10000.0
    %vm46 = vcmp.gt.f32.partialorder %v30, -10000.0
    %vm47 = vcmp.gt.f32.partialorder %v31, -10000.0
    %vm48 = vcmp.gt.f32.partialorder %v32, -10000.0
    %vm49 = vcmp.gt.f32.partialorder %v33, -10000.0
    %vm50 = vcmp.gt.f32.partialorder %v34, -10000.0
    %vm51 = vcmp.gt.f32.partialorder %v35, -10000.0
    %vm52 = vcmp.gt.f32.partialorder %v36, -10000.0
    %vm53 = vcmp.gt.f32.partialorder %v37, -10000.0
    %vm54 = vcmp.gt.f32.partialorder %v38, -10000.0
    %vm55 = vcmp.gt.f32.partialorder %v39, -10000.0
    %vm56 = vcmp.gt.f32.partialorder %v40, -10000.0
    %vm57 = vcmp.le.f32.partialorder %v25, 10000.0
    %vm58 = vcmp.le.f32.partialorder %v26, 10000.0
    %vm59 = vcmp.le.f32.partialorder %v27, 10000.0
    %vm60 = vcmp.le.f32.partialorder %v28, 10000.0
    %vm61 = vcmp.le.f32.partialorder %v29, 10000.0
    %vm62 = vcmp.le.f32.partialorder %v30, 10000.0
    %vm63 = vcmp.le.f32.partialorder %v31, 10000.0
    %vm64 = vcmp.le.f32.partialorder %v32, 10000.0
    %vm65 = vcmp.le.f32.partialorder %v33, 10000.0
    %vm66 = vcmp.le.f32.partialorder %v34, 10000.0
    %vm67 = vcmp.le.f32.partialorder %v35, 10000.0
    %vm68 = vcmp.le.f32.partialorder %v36, 10000.0
    %vm69 = vcmp.le.f32.partialorder %v37, 10000.0
    %vm70 = vcmp.le.f32.partialorder %v38, 10000.0
    %vm71 = vcmp.le.f32.partialorder %v39, 10000.0
    %vm72 = vcmp.le.f32.partialorder %v40, 10000.0
    %vm73 = vmand %vm41, %vm57
    %vm74 = vmand %vm42, %vm58
    %vm75 = vmand %vm43, %vm59
    %vm76 = vmand %vm44, %vm60
    %vm77 = vmand %vm45, %vm61
    %vm78 = vmand %vm46, %vm62
    %vm79 = vmand %vm47, %vm63
    %vm80 = vmand %vm48, %vm64
    %vm81 = vmand %vm49, %vm65
    %vm82 = vmand %vm50, %vm66
    %vm83 = vmand %vm51, %vm67
    %vm84 = vmand %vm52, %vm68
    %vm85 = vmand %vm53, %vm69
    %vm86 = vmand %vm54, %vm70
    %vm87 = vmand %vm55, %vm71
    %vm88 = vmand %vm56, %vm72
    %v89 = vsel %vm73, 0.0, %v25
    %v90 = vsel %vm74, 0.0, %v26
    %v91 = vsel %vm75, 0.0, %v27
    %v92 = vsel %vm76, 0.0, %v28
    %v93 = vsel %vm77, 0.0, %v29
    %v94 = vsel %vm78, 0.0, %v30
    %v95 = vsel %vm79, 0.0, %v31
    %v96 = vsel %vm80, 0.0, %v32
    %v97 = vsel %vm81, 0.0, %v33
    %v98 = vsel %vm82, 0.0, %v34
    %v99 = vsel %vm83, 0.0, %v35
    %v100 = vsel %vm84, 0.0, %v36
    %v101 = vsel %vm85, 0.0, %v37
    %v102 = vsel %vm86, 0.0, %v38
    %v103 = vsel %vm87, 0.0, %v39
    %v104 = vsel %vm88, 0.0, %v40
    %vm105 = vcmask 130048
    %106 = vst.msk [vmem:[#allocation5] sm:$0xff] %vm105, %v89
    %107 = vst.msk [vmem:[#allocation5 + $0x8] sm:$0xff] %vm105, %v90
    %108 = vst.msk [vmem:[#allocation5 + $0x10] sm:$0xff] %vm105, %v91
    %109 = vst.msk [vmem:[#allocation5 + $0x18] sm:$0xff] %vm105, %v92
    %110 = vst.msk [vmem:[#allocation5 + $0x20] sm:$0xff] %vm105, %v93
    %111 = vst.msk [vmem:[#allocation5 + $0x28] sm:$0xff] %vm105, %v94
    %112 = vst.msk [vmem:[#allocation5 + $0x30] sm:$0xff] %vm105, %v95
    %113 = vst.msk [vmem:[#allocation5 + $0x38] sm:$0xff] %vm105, %v96
    %114 = vst.msk [vmem:[#allocation5 + $0x40] sm:$0xff] %vm105, %v97
    %115 = vst.msk [vmem:[#allocation5 + $0x48] sm:$0xff] %vm105, %v98
    %116 = vst.msk [vmem:[#allocation5 + $0x50] sm:$0xff] %vm105, %v99
    %117 = vst.msk [vmem:[#allocation5 + $0x58] sm:$0xff] %vm105, %v100
    %118 = vst.msk [vmem:[#allocation5 + $0x60] sm:$0xff] %vm105, %v101
    %119 = vst.msk [vmem:[#allocation5 + $0x68] sm:$0xff] %vm105, %v102
    %120 = vst.msk [vmem:[#allocation5 + $0x70] sm:$0xff] %vm105, %v103
    %121 = vst.msk [vmem:[#allocation5 + $0x78] sm:$0xff] %vm105, %v104
    // Predicated region
    $region10: #{tpu_custom_call.1} parent=1 // pred_check
      _
    $region11: #{tpu_custom_call.1} parent=1 // pred_check_branch
      %123 = sbr.rel (0) target = $region13
    $region12: #{tpu_custom_call.1} parent=1 // pred_region
      %125 = vsyncadd [#allocation4], 0
      %s126 = sshll.u32 [#allocation5], 4
      %s127 = int_to_ptr.vmem [resolvable:$true] %s126
      %s128 = sshll.u32 %s1, 4
      %s129 = int_to_ptr.hbm [resolvable:$true] %s128
      %134 = dma.vmem_to_hbm [thread:$0]  %s127, 2048, %s129, [#allocation4], 128, 128, 8
    $region13: #{tpu_custom_call.1} parent=1 // pred_fallthru
      _
    // Predicated region
    $region14: #{tpu_custom_call.1} parent=1 // pred_check
      _
    $region15: #{tpu_custom_call.1} parent=1 // pred_check_branch
      %136 = sbr.rel (0) target = $region17
    $region16: #{tpu_custom_call.1} parent=1 // pred_region
      %138 = dma.done [#allocation4], 2048
    $region17: #{tpu_custom_call.1} parent=1 // pred_fallthru
      _
    %139 = vsyncpa [#allocation3], 1
    %140 = vsyncpa [#allocation4], 1

</llo_original>
